<compile_context>
chip_gen: v5e
topology: v5e:2x2
jax: 0.10.0
libtpu: 0.0.40
codegen_flags: <defaults>
</compile_context>

<pallas_src>
import functools

import numpy as np
import jax
import jax.numpy as jnp
from jax.experimental import pallas as pl
from jax.experimental.pallas import tpu as pltpu

# ---------------- small configuration consistent with the module -----------------
B, C, H, W = 2, 4, 16, 16
BLUR_K = (1, 3, 3, 1)          # 1-D blur kernel -> 4x4 separable kernel
PAD = (2, 1)                   # typical Blur pad for k=4 ('same'-size output)
UPSAMPLE_FACTOR = 1


# ---------------- one-time, cached operator construction (host / numpy) ----------
@functools.lru_cache(maxsize=None)
def _blur_operator(blur_kernel_1d, pad, upsample_factor, h, w):
    """Dense blur operator M of shape (h*w, oh*ow) with the zero-padding folded in:
         out_flat = x_flat @ M   reproduces upfirdn2d(x, k, pad) for up=down=1.
    Built on the host once per static config and cached."""
    k = np.asarray(blur_kernel_1d, np.float32)
    if k.ndim == 1:
        k = k[None, :] * k[:, None]
    k = k / k.sum()
    if upsample_factor > 1:
        k = k * (upsample_factor ** 2)
    kf = k[::-1, ::-1]                              # upfirdn2d flips the kernel
    kh, kw = kf.shape
    pad0, pad1 = pad
    oh = h + pad0 + pad1 - kh + 1
    ow = w + pad0 + pad1 - kw + 1

    m = np.zeros((h * w, oh * ow), np.float32)
    for y in range(oh):
        for x in range(ow):
            for ky in range(kh):
                for kx in range(kw):
                    iy = y + ky - pad0              # un-padded input row
                    ix = x + kx - pad0              # un-padded input col
                    if 0 <= iy < h and 0 <= ix < w: # taps in the pad region are zero
                        m[iy * w + ix, y * ow + x] += kf[ky, kx]
    return jnp.asarray(m), oh, ow


# ---------------- Pallas kernel ---------------------------------------------------
def blur_matmul_kernel(x_ref, m_ref, o_ref):
    # Single MXU push: (B*C, H*W) @ (H*W, OH*OW) -> lane-dense (B*C, OH*OW) output.
    o_ref[...] = jnp.dot(x_ref[...], m_ref[...], preferred_element_type=jnp.float32)


@functools.partial(jax.jit, static_argnames=("blur_kernel_1d", "pad", "upsample_factor"))
def blur(x, blur_kernel_1d=BLUR_K, pad=PAD, upsample_factor=UPSAMPLE_FACTOR):
    """x: (B, C, H, W) NCHW float32 -> (B, C, OH, OW) float32 (matches Blur.forward)."""
    b, c, h, w = x.shape
    m, oh, ow = _blur_operator(tuple(blur_kernel_1d), tuple(pad), upsample_factor, h, w)

    xflat = x.reshape(b * c, h * w)                 # free row-major reshape

    out_flat = pl.pallas_call(
        blur_matmul_kernel,
        out_shape=jax.ShapeDtypeStruct((b * c, oh * ow), jnp.float32),
        in_specs=[
            pl.BlockSpec(memory_space=pltpu.VMEM),  # activations: (B*C, 256)
            pl.BlockSpec(memory_space=pltpu.VMEM),  # operator:    (256, 256)
        ],
        out_specs=pl.BlockSpec(memory_space=pltpu.VMEM),
    )(xflat, m)

    return out_flat.reshape(b, c, oh, ow)           # free reshape back to NCHW


# ---------------- pure-JAX reference (upfirdn2d, up=down=1) ----------------------
def reference(x, blur_kernel_1d=BLUR_K, pad=PAD, upsample_factor=UPSAMPLE_FACTOR):
    k = jnp.asarray(blur_kernel_1d, jnp.float32)
    if k.ndim == 1:
        k = k[None, :] * k[:, None]
    k = k / jnp.sum(k)
    if upsample_factor > 1:
        k = k * (upsample_factor ** 2)
    pad0, pad1 = pad
    xp = jnp.pad(x, ((0, 0), (0, 0), (pad0, pad1), (pad0, pad1)))
    w = jnp.flip(k, (0, 1))[None, None]             # (1, 1, KH, KW)
    w = jnp.tile(w, (x.shape[1], 1, 1, 1))          # depthwise: same kernel per channel
    return jax.lax.conv_general_dilated(
        xp, w, window_strides=(1, 1), padding="VALID",
        dimension_numbers=("NCHW", "OIHW", "NCHW"),
        feature_group_count=x.shape[1])


if __name__ == "__main__":
    x = jax.random.normal(jax.random.PRNGKey(0), (B, C, H, W), jnp.float32)

    out = jax.block_until_ready(blur(x))
    ref = jax.block_until_ready(reference(x))

    assert out.shape == ref.shape == (B, C, 16, 16), (out.shape, ref.shape)
    err = float(jnp.max(jnp.abs(out - ref)))
    assert jnp.allclose(out, ref, rtol=1e-4, atol=1e-4), f"max abs err {err}"

    print("KERNEL_OK")
</pallas_src>

<mosaic_0001>
module attributes {stable_mosaic.version = 11 : i64} {
  func.func @blur_matmul_kernel(%arg0: memref<8x256xf32, #tpu.memory_space<vmem>>, %arg1: memref<256x256xf32, #tpu.memory_space<vmem>>, %arg2: memref<8x256xf32, #tpu.memory_space<vmem>>) attributes {dimension_semantics = [], scalar_prefetch = 0 : i64, scratch_operands = 0 : i64, tpu.core_type = #tpu.core_type<tc>} {
    %c0 = arith.constant 0 : index
    %c0_0 = arith.constant 0 : index
    %0 = vector.load %arg0[%c0, %c0_0] : memref<8x256xf32, #tpu.memory_space<vmem>>, vector<8x256xf32>
    %c0_1 = arith.constant 0 : index
    %c0_2 = arith.constant 0 : index
    %1 = vector.load %arg1[%c0_1, %c0_2] : memref<256x256xf32, #tpu.memory_space<vmem>>, vector<256x256xf32>
    %cst = arith.constant dense<0.000000e+00> : vector<8x256xf32>
    %2 = tpu.matmul %0, %1, %cst {dimension_numbers = #tpu.dot_dimension_numbers<[1], [0], [0], [1], [0, 0, 1, 1], [], []>} : vector<8x256xf32>, vector<256x256xf32>, vector<8x256xf32> -> vector<8x256xf32>
    %c0_3 = arith.constant 0 : index
    %c0_4 = arith.constant 0 : index
    %3 = vector.load %arg2[%c0_3, %c0_4] : memref<8x256xf32, #tpu.memory_space<vmem>>, vector<8x256xf32>
    tpu.vector_store %arg2[%c0_3, %c0_4], %2 {strides = array<i32>} : memref<8x256xf32, #tpu.memory_space<vmem>>, vector<8x256xf32>,
    return
  }
}

</mosaic_0001>

<llo_original>
// kernel: blur.1
$region0: #{blur.1}
  #allocation0 [shape = 'u32[]', space=smem, size = 0x4, offset = 0x4, fixed_abs, tag = 'smem constant byte address 0x4 - core index']
  #allocation1 [shape = 'u32[72,128]{1,0:T(1,128)}', space=vmem, size = 0x9000, scoped, tag = 'internal scratch']
  %s0 = inlined_call_operand.vmem [shape: f32[8,256], index: 0, kind: input, shape index: {}]
  %s1 = inlined_call_operand.hbm [shape: f32[256,256], index: 1, kind: input, shape index: {}]
  %s2 = inlined_call_operand.vmem [shape: f32[8,256], index: 2, kind: output, shape index: {}]
  %s3 = sld [smem:[#allocation0]]
  $region22: #{blur.1} parent=0
    _
  %s5 = ssub.s32 1, %s3
  %s6 = scalar_select 0, %s5, %s3
  $region1: #{blur.1} parent=0
    #allocation2 [shape = 'u8[262144]{0}', space=vmem, size = 0x40000, scoped, tag = 'input window, operand 1, single buffered']
    #allocation3 [shape = 's32[1]{0}', space=sflag, size = 0x4, scoped, tag = 'scoped memory for blur.1']
    %7 = vsyncpa [#allocation3], 0
    // Predicated region
    $region2: #{blur.1} parent=1 // pred_check
      _
    $region3: #{blur.1} parent=1 // pred_check_branch
      %9 = sbr.rel (0) target = $region5
    $region4: #{blur.1} parent=1 // pred_region
      _
    $region5: #{blur.1} parent=1 // pred_fallthru
      _
    // Predicated region
    $region6: #{blur.1} parent=1 // pred_check
      _
    $region7: #{blur.1} parent=1 // pred_check_branch
      %11 = sbr.rel (0) target = $region9
    $region8: #{blur.1} parent=1 // pred_region
      %13 = vsyncadd [#allocation3], 0
      %s14 = sshll.u32 %s1, 4
      %s15 = int_to_ptr.hbm [resolvable:$true] %s14
      %s16 = sshll.u32 [#allocation2], 4
      %s17 = int_to_ptr.vmem [resolvable:$true] %s16
      %22 = dma.hbm_to_vmem [thread:$0]  %s15, 8192, %s17, [#allocation3], 256, 256, 16
    $region9: #{blur.1} parent=1 // pred_fallthru
      _
    // Predicated region
    $region10: #{blur.1} parent=1 // pred_check
      _
    $region11: #{blur.1} parent=1 // pred_check_branch
      %24 = sbr.rel (0) target = $region13
    $region12: #{blur.1} parent=1 // pred_region
      %26 = dma.done [#allocation3], 8192
    $region13: #{blur.1} parent=1 // pred_fallthru
      _
    %v27 = vld [vmem:[%s0] sm:$0xff]
    %v28 = vld [vmem:[%s0 + $0x8] sm:$0xff]
    %v29 = vld [vmem:[#allocation2] sm:$0xff]
    %v30 = vld [vmem:[#allocation2 + $0x8] sm:$0xff]
    %v31 = vld [vmem:[#allocation2 + $0x10] sm:$0xff]
    %v32 = vld [vmem:[#allocation2 + $0x18] sm:$0xff]
    %v33 = vld [vmem:[#allocation2 + $0x20] sm:$0xff]
    %v34 = vld [vmem:[#allocation2 + $0x28] sm:$0xff]
    %v35 = vld [vmem:[#allocation2 + $0x30] sm:$0xff]
    %v36 = vld [vmem:[#allocation2 + $0x38] sm:$0xff]
    %v37 = vld [vmem:[#allocation2 + $0x40] sm:$0xff]
    %v38 = vld [vmem:[#allocation2 + $0x48] sm:$0xff]
    %v39 = vld [vmem:[#allocation2 + $0x50] sm:$0xff]
    %v40 = vld [vmem:[#allocation2 + $0x58] sm:$0xff]
    %v41 = vld [vmem:[#allocation2 + $0x60] sm:$0xff]
    %v42 = vld [vmem:[#allocation2 + $0x68] sm:$0xff]
    %v43 = vld [vmem:[#allocation2 + $0x70] sm:$0xff]
    %v44 = vld [vmem:[#allocation2 + $0x78] sm:$0xff]
    %v45 = vld [vmem:[#allocation2 + $0x80] sm:$0xff]
    %v46 = vld [vmem:[#allocation2 + $0x88] sm:$0xff]
    %v47 = vld [vmem:[#allocation2 + $0x90] sm:$0xff]
    %v48 = vld [vmem:[#allocation2 + $0x98] sm:$0xff]
    %v49 = vld [vmem:[#allocation2 + $0xa0] sm:$0xff]
    %v50 = vld [vmem:[#allocation2 + $0xa8] sm:$0xff]
    %v51 = vld [vmem:[#allocation2 + $0xb0] sm:$0xff]
    %v52 = vld [vmem:[#allocation2 + $0xb8] sm:$0xff]
    %v53 = vld [vmem:[#allocation2 + $0xc0] sm:$0xff]
    %v54 = vld [vmem:[#allocation2 + $0xc8] sm:$0xff]
    %v55 = vld [vmem:[#allocation2 + $0xd0] sm:$0xff]
    %v56 = vld [vmem:[#allocation2 + $0xd8] sm:$0xff]
    %v57 = vld [vmem:[#allocation2 + $0xe0] sm:$0xff]
    %v58 = vld [vmem:[#allocation2 + $0xe8] sm:$0xff]
    %v59 = vld [vmem:[#allocation2 + $0xf0] sm:$0xff]
    %v60 = vld [vmem:[#allocation2 + $0xf8] sm:$0xff]
    %v61 = vld [vmem:[#allocation2 + $0x100] sm:$0xff]
    %v62 = vld [vmem:[#allocation2 + $0x108] sm:$0xff]
    %v63 = vld [vmem:[#allocation2 + $0x110] sm:$0xff]
    %v64 = vld [vmem:[#allocation2 + $0x118] sm:$0xff]
    %v65 = vld [vmem:[#allocation2 + $0x120] sm:$0xff]
    %v66 = vld [vmem:[#allocation2 + $0x128] sm:$0xff]
    %v67 = vld [vmem:[#allocation2 + $0x130] sm:$0xff]
    %v68 = vld [vmem:[#allocation2 + $0x138] sm:$0xff]
    %v69 = vld [vmem:[#allocation2 + $0x140] sm:$0xff]
    %v70 = vld [vmem:[#allocation2 + $0x148] sm:$0xff]
    %v71 = vld [vmem:[#allocation2 + $0x150] sm:$0xff]
    %v72 = vld [vmem:[#allocation2 + $0x158] sm:$0xff]
    %v73 = vld [vmem:[#allocation2 + $0x160] sm:$0xff]
    %v74 = vld [vmem:[#allocation2 + $0x168] sm:$0xff]
    %v75 = vld [vmem:[#allocation2 + $0x170] sm:$0xff]
    %v76 = vld [vmem:[#allocation2 + $0x178] sm:$0xff]
    %v77 = vld [vmem:[#allocation2 + $0x180] sm:$0xff]
    %v78 = vld [vmem:[#allocation2 + $0x188] sm:$0xff]
    %v79 = vld [vmem:[#allocation2 + $0x190] sm:$0xff]
    %v80 = vld [vmem:[#allocation2 + $0x198] sm:$0xff]
    %v81 = vld [vmem:[#allocation2 + $0x1a0] sm:$0xff]
    %v82 = vld [vmem:[#allocation2 + $0x1a8] sm:$0xff]
    %v83 = vld [vmem:[#allocation2 + $0x1b0] sm:$0xff]
    %v84 = vld [vmem:[#allocation2 + $0x1b8] sm:$0xff]
    %v85 = vld [vmem:[#allocation2 + $0x1c0] sm:$0xff]
    %v86 = vld [vmem:[#allocation2 + $0x1c8] sm:$0xff]
    %v87 = vld [vmem:[#allocation2 + $0x1d0] sm:$0xff]
    %v88 = vld [vmem:[#allocation2 + $0x1d8] sm:$0xff]
    %v89 = vld [vmem:[#allocation2 + $0x1e0] sm:$0xff]
    %v90 = vld [vmem:[#allocation2 + $0x1e8] sm:$0xff]
    %v91 = vld [vmem:[#allocation2 + $0x1f0] sm:$0xff]
    %v92 = vld [vmem:[#allocation2 + $0x1f8] sm:$0xff]
    %93 = vmatpush.msra.mxu0 %v59
    %94 = vmatpush.msra.mxu0 %v57
    %95 = vmatpush.msra.mxu0 %v55
    %96 = vmatpush.msra.mxu0 %v53
    %97 = vmatpush.msra.mxu0 %v51
    %98 = vmatpush.msra.mxu0 %v49
    %99 = vmatpush.msra.mxu0 %v47
    %100 = vmatpush.msra.mxu0 %v45
    %101 = vmatpush.msra.mxu0 %v43
    %102 = vmatpush.msra.mxu0 %v41
    %103 = vmatpush.msra.mxu0 %v39
    %104 = vmatpush.msra.mxu0 %v37
    %105 = vmatpush.msra.mxu0 %v35
    %106 = vmatpush.msra.mxu0 %v33
    %107 = vmatpush.msra.mxu0 %v31
    %108 = vmatpush.msra.mxu0 %v29
    %109 = vmatmul.f32.gmra.mxu0 %v27
    %v110 = vpop.f32.mrf.mxu0
    %v111 = vadd.f32 0.0, %v110
    %112 = vdwg.mxu0
    %113 = vmatpush.msra.mxu0 %v91
    %114 = vmatpush.msra.mxu0 %v89
    %115 = vmatpush.msra.mxu0 %v87
    %116 = vmatpush.msra.mxu0 %v85
    %117 = vmatpush.msra.mxu0 %v83
    %118 = vmatpush.msra.mxu0 %v81
    %119 = vmatpush.msra.mxu0 %v79
    %120 = vmatpush.msra.mxu0 %v77
    %121 = vmatpush.msra.mxu0 %v75
    %122 = vmatpush.msra.mxu0 %v73
    %123 = vmatpush.msra.mxu0 %v71
    %124 = vmatpush.msra.mxu0 %v69
    %125 = vmatpush.msra.mxu0 %v67
    %126 = vmatpush.msra.mxu0 %v65
    %127 = vmatpush.msra.mxu0 %v63
    %128 = vmatpush.msra.mxu0 %v61
    %129 = vmatmul.f32.gmra.mxu0 %v28
    %v130 = vpop.f32.mrf.mxu0
    %v131 = vadd.f32 %v111, %v130
    %132 = vdwg.mxu0
    %133 = vmatpush.msra.mxu0 %v60
    %134 = vmatpush.msra.mxu0 %v58
    %135 = vmatpush.msra.mxu0 %v56
    %136 = vmatpush.msra.mxu0 %v54
    %137 = vmatpush.msra.mxu0 %v52
    %138 = vmatpush.msra.mxu0 %v50
    %139 = vmatpush.msra.mxu0 %v48
    %140 = vmatpush.msra.mxu0 %v46
    %141 = vmatpush.msra.mxu0 %v44
    %142 = vmatpush.msra.mxu0 %v42
    %143 = vmatpush.msra.mxu0 %v40
    %144 = vmatpush.msra.mxu0 %v38
    %145 = vmatpush.msra.mxu0 %v36
    %146 = vmatpush.msra.mxu0 %v34
    %147 = vmatpush.msra.mxu0 %v32
    %148 = vmatpush.msra.mxu0 %v30
    %149 = vmatmul.f32.gmra.mxu0 %v27
    %v150 = vpop.f32.mrf.mxu0
    %v151 = vadd.f32 0.0, %v150
    %152 = vdwg.mxu0
    %153 = vmatpush.msra.mxu0 %v92
    %154 = vmatpush.msra.mxu0 %v90
    %155 = vmatpush.msra.mxu0 %v88
    %156 = vmatpush.msra.mxu0 %v86
    %157 = vmatpush.msra.mxu0 %v84
    %158 = vmatpush.msra.mxu0 %v82
    %159 = vmatpush.msra.mxu0 %v80
    %160 = vmatpush.msra.mxu0 %v78
    %161 = vmatpush.msra.mxu0 %v76
    %162 = vmatpush.msra.mxu0 %v74
    %163 = vmatpush.msra.mxu0 %v72
    %164 = vmatpush.msra.mxu0 %v70
    %165 = vmatpush.msra.mxu0 %v68
    %166 = vmatpush.msra.mxu0 %v66
    %167 = vmatpush.msra.mxu0 %v64
    %168 = vmatpush.msra.mxu0 %v62
    %169 = vmatmul.f32.gmra.mxu0 %v28
    %v170 = vpop.f32.mrf.mxu0
    %v171 = vadd.f32 %v151, %v170
    %172 = vdwg.mxu0
    %173 = vst [vmem:[%s2] sm:$0xff] %v131
    %174 = vst [vmem:[%s2 + $0x8] sm:$0xff] %v171
    // Predicated region
    $region14: #{blur.1} parent=1 // pred_check
      _
    $region15: #{blur.1} parent=1 // pred_check_branch
      %176 = sbr.rel (0) target = $region17
    $region16: #{blur.1} parent=1 // pred_region
      _
    $region17: #{blur.1} parent=1 // pred_fallthru
      _
    // Predicated region
    $region18: #{blur.1} parent=1 // pred_check
      _
    $region19: #{blur.1} parent=1 // pred_check_branch
      %178 = sbr.rel (0) target = $region21
    $region20: #{blur.1} parent=1 // pred_region
      _
    $region21: #{blur.1} parent=1 // pred_fallthru
      _
    %179 = vsyncpa [#allocation3], 1

</llo_original>
